<compile_context>
chip_gen: v7x
topology: tpu7x:2x2x1
jax: 0.10.0
libtpu: 0.0.40
codegen_flags: <defaults>
</compile_context>

<pallas_src>
import jax
import jax.numpy as jnp
from jax.experimental import pallas as pl
from jax.experimental.pallas import tpu as pltpu


def _round_up(n, m):
    return ((n + m - 1) // m) * m


def _mlp_kernel(x_ref, w1_ref, b1_ref, w2_ref, b2_ref, o_ref):
    """Fused fc1 -> ReLU -> fc2 on one (features, TB) batch tile.

    x_ref : (in_f, TB)      activations, batch on lanes (lane-dense)
    w1_ref: (hid, in_f)     PyTorch layout (out_features, in_features)
    b1_ref: (hid, 1)
    w2_ref: (out_f, hid)
    b2_ref: (out_f, 1)
    o_ref : (out_f, TB)
    """
    x = x_ref[...].astype(jnp.float32)   # (in_f, TB), f32 accumulation
    w1 = w1_ref[...]                     # (hid, in_f)
    w2 = w2_ref[...]                     # (out_f, hid)
    in_f = x.shape[0]
    hid = w1.shape[0]
    out_f = w2.shape[0]
    tb = x.shape[1]

    # fc1 + bias as unrolled VPU broadcast-MACs (no MXU for K=4).
    h = jnp.broadcast_to(b1_ref[...], (hid, tb))
    for k in range(in_f):                # static unroll, 4 iters
        h = h + w1[:, k:k + 1] * x[k:k + 1, :]
    # ReLU
    h = jnp.maximum(h, 0.0)

    # fc2 + bias
    y = jnp.broadcast_to(b2_ref[...], (out_f, tb))
    for k in range(hid):                 # static unroll, 4 iters
        y = y + w2[:, k:k + 1] * h[k:k + 1, :]

    o_ref[...] = y.astype(o_ref.dtype)   # lane-dense, unmasked store


def net_forward_feature_major(x_fm, w1, b1, w2, b2, *, tb=262144):
    """Primary (fast) API: feature-major activations, no layout plumbing.

    x_fm: (4, B)  activations (f32 or bf16), batch on the last axis
    w1  : (4, 4)  PyTorch layout (out_features, in_features)
    b1  : (4,)
    w2  : (3, 4)
    b2  : (3,)
    returns (3, B) in x_fm.dtype
    """
    in_f, B = x_fm.shape
    hid = w1.shape[0]
    out_f = w2.shape[0]

    # Batch tile: multiple of 128 lanes.  Keep >= 2 tiles when the batch is
    # large enough so the "parallel" grid axis can use both v7x TensorCores.
    b128 = _round_up(max(B, 1), 128)
    TB = min(tb, b128)
    if b128 >= 256:
        TB = min(TB, _round_up(pl.cdiv(b128, 2), 128))
    TB = _round_up(max(TB, 128), 128)

    grid = (pl.cdiv(B, TB),)

    itemsize = jnp.dtype(x_fm.dtype).itemsize
    cost = pl.CostEstimate(
        flops=2 * B * (in_f * hid + hid * out_f) + B * (hid + out_f),
        transcendentals=0,
        bytes_accessed=B * (in_f + out_f) * itemsize,
    )

    out_fm = pl.pallas_call(
        _mlp_kernel,
        out_shape=jax.ShapeDtypeStruct((out_f, B), x_fm.dtype),
        grid_spec=pltpu.PrefetchScalarGridSpec(
            num_scalar_prefetch=0,
            grid=grid,
            in_specs=[
                # activations: tiled over batch (lanes); partial last block OK
                pl.BlockSpec((in_f, TB), lambda i: (0, i)),
                # weights / biases: constant index_map -> VMEM-resident
                pl.BlockSpec((hid, in_f), lambda i: (0, 0)),
                pl.BlockSpec((hid, 1), lambda i: (0, 0)),
                pl.BlockSpec((out_f, hid), lambda i: (0, 0)),
                pl.BlockSpec((out_f, 1), lambda i: (0, 0)),
            ],
            out_specs=pl.BlockSpec((out_f, TB), lambda i: (0, i)),
        ),
        compiler_params=pltpu.CompilerParams(
            dimension_semantics=("parallel",),          # both TCs on v7x
            vmem_limit_bytes=32 * 1024 * 1024,          # covers v5e's 16 MiB default
        ),
        cost_estimate=cost,
    )(x_fm, w1, b1.reshape(hid, 1), w2, b2.reshape(out_f, 1))

    return out_fm


def net_forward(x, w1, b1, w2, b2, *, tb=262144):
    """PyTorch-shape-compatible wrapper: x (B, 4) -> (B, 3).

    NOTE: the two transposes here each cost a full extra HBM pass on a
    bandwidth-bound op; large-batch callers should use
    net_forward_feature_major ((4, B) in, (3, B) out) directly.
    """
    return net_forward_feature_major(x.T, w1, b1, w2, b2, tb=tb).T


def init_params(key):
    # PyTorch-layout parameters for Net:
    #   fc1: Linear(4, 4) -> W1 (4, 4), b1 (4,)
    #   fc2: Linear(4, 3) -> W2 (3, 4), b2 (3,)
    # Mimic PyTorch's U(-1/sqrt(fan_in), 1/sqrt(fan_in)) init.
    k1, k2, k3, k4 = jax.random.split(key, 4)
    bound1 = 1.0 / jnp.sqrt(4.0)
    bound2 = 1.0 / jnp.sqrt(4.0)
    w1 = jax.random.uniform(k1, (4, 4), jnp.float32, -bound1, bound1)
    b1 = jax.random.uniform(k2, (4,), jnp.float32, -bound1, bound1)
    w2 = jax.random.uniform(k3, (3, 4), jnp.float32, -bound2, bound2)
    b2 = jax.random.uniform(k4, (3,), jnp.float32, -bound2, bound2)
    return w1, b1, w2, b2


if __name__ == "__main__":
    key = jax.random.PRNGKey(0)
    kx, kp = jax.random.split(key)

    batch = 8
    x = jax.random.normal(kx, (batch, 4), jnp.float32)
    w1, b1, w2, b2 = init_params(kp)

    # Pure-JAX reference (PyTorch semantics: y = x @ W.T + b).
    ref = jnp.maximum(x @ w1.T + b1, 0.0) @ w2.T + b2

    # Fast feature-major path (no wrapper transposes).
    out_fm = net_forward_feature_major(x.T, w1, b1, w2, b2)
    jax.block_until_ready(out_fm)
    assert out_fm.shape == (3, batch)
    assert jnp.allclose(out_fm.T, ref, atol=1e-5, rtol=1e-5)

    # PyTorch-shape-compatible path.
    out = net_forward(x, w1, b1, w2, b2)
    jax.block_until_ready(out)
    assert out.shape == (batch, 3)
    assert jnp.allclose(out, ref, atol=1e-5, rtol=1e-5)

    print("KERNEL_OK")
</pallas_src>

<mosaic_0001>
module attributes {stable_mosaic.version = 11 : i64} {
  func.func @_mlp_kernel(%arg0: i32, %arg1: memref<4x128xf32, #tpu.memory_space<vmem>>, %arg2: memref<4x4xf32, #tpu.memory_space<vmem>>, %arg3: memref<4x1xf32, #tpu.memory_space<vmem>>, %arg4: memref<3x4xf32, #tpu.memory_space<vmem>>, %arg5: memref<3x1xf32, #tpu.memory_space<vmem>>, %arg6: memref<3x128xf32, #tpu.memory_space<vmem>>) attributes {dimension_semantics = [#tpu.dimension_semantics<parallel>], iteration_bounds = array<i64: 1>, scalar_prefetch = 0 : i64, scratch_operands = 0 : i64, tpu.core_type = #tpu.core_type<tc>, window_params = [{transform_indices = @transform_0, window_bounds = array<i64: 4, 128>}, {pipeline_mode = #tpu.pipeline_mode<synchronous>, transform_indices = @transform_1, window_bounds = array<i64: 4, 4>}, {pipeline_mode = #tpu.pipeline_mode<synchronous>, transform_indices = @transform_2, window_bounds = array<i64: 4, 1>}, {pipeline_mode = #tpu.pipeline_mode<synchronous>, transform_indices = @transform_3, window_bounds = array<i64: 3, 4>}, {pipeline_mode = #tpu.pipeline_mode<synchronous>, transform_indices = @transform_4, window_bounds = array<i64: 3, 1>}, {transform_indices = @transform_5, window_bounds = array<i64: 3, 128>}]} {
    %c0 = arith.constant 0 : index
    %c0_0 = arith.constant 0 : index
    %0 = vector.load %arg1[%c0, %c0_0] : memref<4x128xf32, #tpu.memory_space<vmem>>, vector<4x128xf32>
    %c0_1 = arith.constant 0 : index
    %c0_2 = arith.constant 0 : index
    %1 = vector.load %arg2[%c0_1, %c0_2] : memref<4x4xf32, #tpu.memory_space<vmem>>, vector<4x4xf32>
    %c0_3 = arith.constant 0 : index
    %c0_4 = arith.constant 0 : index
    %2 = vector.load %arg4[%c0_3, %c0_4] : memref<3x4xf32, #tpu.memory_space<vmem>>, vector<3x4xf32>
    %c0_5 = arith.constant 0 : index
    %c0_6 = arith.constant 0 : index
    %3 = vector.load %arg3[%c0_5, %c0_6] : memref<4x1xf32, #tpu.memory_space<vmem>>, vector<4x1xf32>
    %4 = vector.shape_cast %3 : vector<4x1xf32> to vector<4x1xf32>
    %5 = vector.broadcast %4 : vector<4x1xf32> to vector<4x128xf32>
    %6 = vector.extract_strided_slice %1 {offsets = [0, 0], sizes = [4, 1], strides = [1, 1]} : vector<4x4xf32> to vector<4x1xf32>
    %7 = vector.extract_strided_slice %0 {offsets = [0, 0], sizes = [1, 128], strides = [1, 1]} : vector<4x128xf32> to vector<1x128xf32>
    %8 = vector.broadcast %6 : vector<4x1xf32> to vector<4x128xf32>
    %9 = vector.broadcast %7 : vector<1x128xf32> to vector<4x128xf32>
    %10 = arith.mulf %8, %9 : vector<4x128xf32>
    %11 = arith.addf %5, %10 : vector<4x128xf32>
    %12 = vector.extract_strided_slice %1 {offsets = [0, 1], sizes = [4, 1], strides = [1, 1]} : vector<4x4xf32> to vector<4x1xf32>
    %13 = vector.extract_strided_slice %0 {offsets = [1, 0], sizes = [1, 128], strides = [1, 1]} : vector<4x128xf32> to vector<1x128xf32>
    %14 = vector.broadcast %12 : vector<4x1xf32> to vector<4x128xf32>
    %15 = vector.broadcast %13 : vector<1x128xf32> to vector<4x128xf32>
    %16 = arith.mulf %14, %15 : vector<4x128xf32>
    %17 = arith.addf %11, %16 : vector<4x128xf32>
    %18 = vector.extract_strided_slice %1 {offsets = [0, 2], sizes = [4, 1], strides = [1, 1]} : vector<4x4xf32> to vector<4x1xf32>
    %19 = vector.extract_strided_slice %0 {offsets = [2, 0], sizes = [1, 128], strides = [1, 1]} : vector<4x128xf32> to vector<1x128xf32>
    %20 = vector.broadcast %18 : vector<4x1xf32> to vector<4x128xf32>
    %21 = vector.broadcast %19 : vector<1x128xf32> to vector<4x128xf32>
    %22 = arith.mulf %20, %21 : vector<4x128xf32>
    %23 = arith.addf %17, %22 : vector<4x128xf32>
    %24 = vector.extract_strided_slice %1 {offsets = [0, 3], sizes = [4, 1], strides = [1, 1]} : vector<4x4xf32> to vector<4x1xf32>
    %25 = vector.extract_strided_slice %0 {offsets = [3, 0], sizes = [1, 128], strides = [1, 1]} : vector<4x128xf32> to vector<1x128xf32>
    %26 = vector.broadcast %24 : vector<4x1xf32> to vector<4x128xf32>
    %27 = vector.broadcast %25 : vector<1x128xf32> to vector<4x128xf32>
    %28 = arith.mulf %26, %27 : vector<4x128xf32>
    %29 = arith.addf %23, %28 : vector<4x128xf32>
    %cst = arith.constant 0.000000e+00 : f32
    %30 = vector.broadcast %cst : f32 to vector<4x128xf32>
    %31 = arith.maximumf %29, %30 : vector<4x128xf32>
    %c0_7 = arith.constant 0 : index
    %c0_8 = arith.constant 0 : index
    %32 = vector.load %arg5[%c0_7, %c0_8] : memref<3x1xf32, #tpu.memory_space<vmem>>, vector<3x1xf32>
    %33 = vector.shape_cast %32 : vector<3x1xf32> to vector<3x1xf32>
    %34 = vector.broadcast %33 : vector<3x1xf32> to vector<3x128xf32>
    %35 = vector.extract_strided_slice %2 {offsets = [0, 0], sizes = [3, 1], strides = [1, 1]} : vector<3x4xf32> to vector<3x1xf32>
    %36 = vector.extract_strided_slice %31 {offsets = [0, 0], sizes = [1, 128], strides = [1, 1]} : vector<4x128xf32> to vector<1x128xf32>
    %37 = vector.broadcast %35 : vector<3x1xf32> to vector<3x128xf32>
    %38 = vector.broadcast %36 : vector<1x128xf32> to vector<3x128xf32>
    %39 = arith.mulf %37, %38 : vector<3x128xf32>
    %40 = arith.addf %34, %39 : vector<3x128xf32>
    %41 = vector.extract_strided_slice %2 {offsets = [0, 1], sizes = [3, 1], strides = [1, 1]} : vector<3x4xf32> to vector<3x1xf32>
    %42 = vector.extract_strided_slice %31 {offsets = [1, 0], sizes = [1, 128], strides = [1, 1]} : vector<4x128xf32> to vector<1x128xf32>
    %43 = vector.broadcast %41 : vector<3x1xf32> to vector<3x128xf32>
    %44 = vector.broadcast %42 : vector<1x128xf32> to vector<3x128xf32>
    %45 = arith.mulf %43, %44 : vector<3x128xf32>
    %46 = arith.addf %40, %45 : vector<3x128xf32>
    %47 = vector.extract_strided_slice %2 {offsets = [0, 2], sizes = [3, 1], strides = [1, 1]} : vector<3x4xf32> to vector<3x1xf32>
    %48 = vector.extract_strided_slice %31 {offsets = [2, 0], sizes = [1, 128], strides = [1, 1]} : vector<4x128xf32> to vector<1x128xf32>
    %49 = vector.broadcast %47 : vector<3x1xf32> to vector<3x128xf32>
    %50 = vector.broadcast %48 : vector<1x128xf32> to vector<3x128xf32>
    %51 = arith.mulf %49, %50 : vector<3x128xf32>
    %52 = arith.addf %46, %51 : vector<3x128xf32>
    %53 = vector.extract_strided_slice %2 {offsets = [0, 3], sizes = [3, 1], strides = [1, 1]} : vector<3x4xf32> to vector<3x1xf32>
    %54 = vector.extract_strided_slice %31 {offsets = [3, 0], sizes = [1, 128], strides = [1, 1]} : vector<4x128xf32> to vector<1x128xf32>
    %55 = vector.broadcast %53 : vector<3x1xf32> to vector<3x128xf32>
    %56 = vector.broadcast %54 : vector<1x128xf32> to vector<3x128xf32>
    %57 = arith.mulf %55, %56 : vector<3x128xf32>
    %58 = arith.addf %52, %57 : vector<3x128xf32>
    %c0_9 = arith.constant 0 : index
    %c0_10 = arith.constant 0 : index
    %59 = vector.load %arg6[%c0_9, %c0_10] : memref<3x128xf32, #tpu.memory_space<vmem>>, vector<3x128xf32>
    tpu.vector_store %arg6[%c0_9, %c0_10], %58 {strides = array<i32>} : memref<3x128xf32, #tpu.memory_space<vmem>>, vector<3x128xf32>,
    return
  }
  func.func @transform_0(%arg0: i32) -> (i32, i32) {
    %c0_i32 = arith.constant 0 : i32
    %c0_i32_0 = arith.constant 0 : i32
    return %c0_i32, %arg0 : i32, i32
  }
  func.func @transform_1(%arg0: i32) -> (i32, i32) {
    %c0_i32 = arith.constant 0 : i32
    %c0_i32_0 = arith.constant 0 : i32
    %c0_i32_1 = arith.constant 0 : i32
    return %c0_i32, %c0_i32_0 : i32, i32
  }
  func.func @transform_2(%arg0: i32) -> (i32, i32) {
    %c0_i32 = arith.constant 0 : i32
    %c0_i32_0 = arith.constant 0 : i32
    %c0_i32_1 = arith.constant 0 : i32
    return %c0_i32, %c0_i32_0 : i32, i32
  }
  func.func @transform_3(%arg0: i32) -> (i32, i32) {
    %c0_i32 = arith.constant 0 : i32
    %c0_i32_0 = arith.constant 0 : i32
    %c0_i32_1 = arith.constant 0 : i32
    return %c0_i32, %c0_i32_0 : i32, i32
  }
  func.func @transform_4(%arg0: i32) -> (i32, i32) {
    %c0_i32 = arith.constant 0 : i32
    %c0_i32_0 = arith.constant 0 : i32
    %c0_i32_1 = arith.constant 0 : i32
    return %c0_i32, %c0_i32_0 : i32, i32
  }
  func.func @transform_5(%arg0: i32) -> (i32, i32) {
    %c0_i32 = arith.constant 0 : i32
    %c0_i32_0 = arith.constant 0 : i32
    return %c0_i32, %arg0 : i32, i32
  }
}

</mosaic_0001>

<llo_original>
// kernel: tpu_custom_call.1
$region0: #{tpu_custom_call.1}
  #allocation0 [shape = 'u32[]', space=smem, size = 0x4, offset = 0x4, fixed_abs, tag = 'smem constant byte address 0x4 - core index']
  #allocation1 [shape = 'u32[144,128]{1,0:T(1,128)}', space=vmem, size = 0x12000, scoped, tag = 'internal scratch']
  %s0 = inlined_call_operand.vmem [shape: f32[4,8], index: 0, kind: input, shape index: {}]
  %s1 = inlined_call_operand.vmem [shape: f32[4,4], index: 1, kind: input, shape index: {}]
  %s2 = inlined_call_operand.vmem [shape: f32[4,1], index: 2, kind: input, shape index: {}]
  %s3 = inlined_call_operand.vmem [shape: f32[3,4], index: 3, kind: input, shape index: {}]
  %s4 = inlined_call_operand.vmem [shape: f32[3,1], index: 4, kind: input, shape index: {}]
  %s5 = inlined_call_operand.hbm [shape: f32[3,8], index: 5, kind: output, shape index: {}]
  %s6 = sld [smem:[#allocation0]]
  $region30: #{tpu_custom_call.1} parent=0
    _
  %s8 = ssub.s32 1, %s6
  %s9 = scalar_select 0, %s8, %s6
  $region1: #{tpu_custom_call.1} parent=0
    #allocation2 [shape = 'u8[2048]{0}', space=vmem, size = 0x800, scoped, tag = 'output window, operand 0, single buffered']
    #allocation3 [shape = 's32[1]{0}', space=sflag, size = 0x4, scoped, tag = 'scoped memory for tpu_custom_call.1']
    %10 = vsyncpa [#allocation3], 0
    // Predicated region
    $region2: #{tpu_custom_call.1} parent=1 // pred_check
      _
    $region3: #{tpu_custom_call.1} parent=1 // pred_check_branch
      %12 = sbr.rel (0) target = $region5
    $region4: #{tpu_custom_call.1} parent=1 // pred_region
      _
    $region5: #{tpu_custom_call.1} parent=1 // pred_fallthru
      _
    // Predicated region
    $region6: #{tpu_custom_call.1} parent=1 // pred_check
      _
    $region7: #{tpu_custom_call.1} parent=1 // pred_check_branch
      %14 = sbr.rel (0) target = $region9
    $region8: #{tpu_custom_call.1} parent=1 // pred_region
      _
    $region9: #{tpu_custom_call.1} parent=1 // pred_fallthru
      _
    // Predicated region
    $region10: #{tpu_custom_call.1} parent=1 // pred_check
      _
    $region11: #{tpu_custom_call.1} parent=1 // pred_check_branch
      %16 = sbr.rel (0) target = $region13
    $region12: #{tpu_custom_call.1} parent=1 // pred_region
      _
    $region13: #{tpu_custom_call.1} parent=1 // pred_fallthru
      _
    // Predicated region
    $region14: #{tpu_custom_call.1} parent=1 // pred_check
      _
    $region15: #{tpu_custom_call.1} parent=1 // pred_check_branch
      %18 = sbr.rel (0) target = $region17
    $region16: #{tpu_custom_call.1} parent=1 // pred_region
      _
    $region17: #{tpu_custom_call.1} parent=1 // pred_fallthru
      _
    // Predicated region
    $region18: #{tpu_custom_call.1} parent=1 // pred_check
      _
    $region19: #{tpu_custom_call.1} parent=1 // pred_check_branch
      %20 = sbr.rel (0) target = $region21
    $region20: #{tpu_custom_call.1} parent=1 // pred_region
      _
    $region21: #{tpu_custom_call.1} parent=1 // pred_fallthru
      _
    %v21 = vld [vmem:[%s0] sm:$0xf]
    %v22 = vld [vmem:[%s1] sm:$0xf]
    %v23 = vld [vmem:[%s3] sm:$0x7]
    %v24 = vld [vmem:[%s2] sm:$0xf]
    %26 = vset.pattern.permute.xlu0 0
    %27 = vperm.xlu0 %26, %v24
    %v28 = vpop.permute.xlu0 %27
    %31 = vset.pattern.permute.xlu0 0
    %32 = vperm.xlu0 %31, %v22
    %v33 = vpop.permute.xlu0 %32
    %v35 = vlaneseq
    %v36 = vshrl.u32 %v35, 7
    %v37 = vsub.s32 0, %v36
    %v38 = vrot.slane %v21, %v37
    %v39 = vmul.f32 %v33, %v38
    %v40 = vadd.f32 %v28, %v39
    %41 = vset.pattern.permute.xlu0 1
    %42 = vperm.xlu0 %41, %v22
    %v43 = vpop.permute.xlu0 %42
    %v45 = vlaneseq
    %v46 = vshrl.u32 %v45, 7
    %v47 = vsub.s32 1, %v46
    %v48 = vrot.slane %v21, %v47
    %v49 = vmul.f32 %v43, %v48
    %v50 = vadd.f32 %v40, %v49
    %51 = vset.pattern.permute.xlu0 2
    %52 = vperm.xlu0 %51, %v22
    %v53 = vpop.permute.xlu0 %52
    %v55 = vlaneseq
    %v56 = vshrl.u32 %v55, 7
    %v57 = vsub.s32 2, %v56
    %v58 = vrot.slane %v21, %v57
    %v59 = vmul.f32 %v53, %v58
    %v60 = vadd.f32 %v50, %v59
    %61 = vset.pattern.permute.xlu0 3
    %62 = vperm.xlu0 %61, %v22
    %v63 = vpop.permute.xlu0 %62
    %v65 = vlaneseq
    %v66 = vshrl.u32 %v65, 7
    %v67 = vsub.s32 3, %v66
    %v68 = vrot.slane %v21, %v67
    %v69 = vmul.f32 %v63, %v68
    %v70 = vadd.f32 %v60, %v69
    %v71 = vmax.f32 %v70, 0.0
    %v72 = vld [vmem:[%s4] sm:$0x7]
    %74 = vset.pattern.permute.xlu0 0
    %75 = vperm.xlu0 %74, %v72
    %v76 = vpop.permute.xlu0 %75
    %79 = vset.pattern.permute.xlu0 0
    %80 = vperm.xlu0 %79, %v23
    %v81 = vpop.permute.xlu0 %80
    %v83 = vlaneseq
    %v84 = vshrl.u32 %v83, 7
    %v85 = vsub.s32 0, %v84
    %v86 = vrot.slane %v71, %v85
    %v87 = vmul.f32 %v81, %v86
    %v88 = vadd.f32 %v76, %v87
    %89 = vset.pattern.permute.xlu0 1
    %90 = vperm.xlu0 %89, %v23
    %v91 = vpop.permute.xlu0 %90
    %v93 = vlaneseq
    %v94 = vshrl.u32 %v93, 7
    %v95 = vsub.s32 1, %v94
    %v96 = vrot.slane %v71, %v95
    %v97 = vmul.f32 %v91, %v96
    %v98 = vadd.f32 %v88, %v97
    %99 = vset.pattern.permute.xlu0 2
    %100 = vperm.xlu0 %99, %v23
    %v101 = vpop.permute.xlu0 %100
    %v103 = vlaneseq
    %v104 = vshrl.u32 %v103, 7
    %v105 = vsub.s32 2, %v104
    %v106 = vrot.slane %v71, %v105
    %v107 = vmul.f32 %v101, %v106
    %v108 = vadd.f32 %v98, %v107
    %109 = vset.pattern.permute.xlu0 3
    %110 = vperm.xlu0 %109, %v23
    %v111 = vpop.permute.xlu0 %110
    %v113 = vlaneseq
    %v114 = vshrl.u32 %v113, 7
    %v115 = vsub.s32 3, %v114
    %v116 = vrot.slane %v71, %v115
    %v117 = vmul.f32 %v111, %v116
    %v118 = vadd.f32 %v108, %v117
    %119 = vst [vmem:[#allocation2] sm:$0x7] %v118
    // Predicated region
    $region22: #{tpu_custom_call.1} parent=1 // pred_check
      _
    $region23: #{tpu_custom_call.1} parent=1 // pred_check_branch
      %121 = sbr.rel (0) target = $region25
    $region24: #{tpu_custom_call.1} parent=1 // pred_region
      %s123 = ssub.s32 64, 64
      %124 = vsyncadd [#allocation3], %s123
      %s126 = sshll.u32 [#allocation2], 4
      %s127 = int_to_ptr.vmem [resolvable:$true] %s126
      %129 = dma.vmem_to_hbm [thread:$0]  %s127, 64, %s5, [#allocation3]
    $region25: #{tpu_custom_call.1} parent=1 // pred_fallthru
      _
    // Predicated region
    $region26: #{tpu_custom_call.1} parent=1 // pred_check
      _
    $region27: #{tpu_custom_call.1} parent=1 // pred_check_branch
      %131 = sbr.rel (0) target = $region29
    $region28: #{tpu_custom_call.1} parent=1 // pred_region
      %132 = dma.done [#allocation3], 64
    $region29: #{tpu_custom_call.1} parent=1 // pred_fallthru
      _
    %133 = vsyncpa [#allocation3], 1

</llo_original>
